<compile_context>
chip_gen: v5e
topology: v5e:2x2
jax: 0.10.0
libtpu: 0.0.40
codegen_flags: <defaults>
</compile_context>

<pallas_src>
import functools

import jax
import jax.numpy as jnp
from jax.experimental import pallas as pl
from jax.experimental.pallas import tpu as pltpu


def _fused_predictor_kernel(x_ref, w_ref, b_ref, out_ref):
    # One MXU pass over the fused weight; f32 accumulation + f32 bias.
    acc = jnp.dot(x_ref[...], w_ref[...], preferred_element_type=jnp.float32)
    out_ref[...] = (acc + b_ref[...]).astype(out_ref.dtype)


def _round_up(v, m):
    return ((v + m - 1) // m) * m


@functools.partial(jax.jit, static_argnames=("block_n", "use_bf16"))
def fast_rcnn_predictor_kl(x, params, *, block_n=256, use_bf16=True):
    """Fused FastRCNNPredictorKL forward.

    x:      [N, C] or [N, C, 1, 1] float32
    params: dict with cls_w [C,K], cls_b [1,K], bbox_w [C,4K], bbox_b [1,4K],
            std_w [C,4K], std_b [1,4K] (weights already transposed to [in,out]).
    Returns (scores [N,K], bbox_deltas [N,4K], bbox_stds [N,4K]) in f32.
    """
    if x.ndim == 4:
        assert x.shape[2] == 1 and x.shape[3] == 1
    x = x.reshape(x.shape[0], -1)  # flatten(start_dim=1)
    n, c = x.shape

    wc, bc = params["cls_w"], params["cls_b"]
    wb, bb = params["bbox_w"], params["bbox_b"]
    ws, bs = params["std_w"], params["std_b"]
    k = wc.shape[1]
    k4 = wb.shape[1]
    k_total = k + 2 * k4

    # ---- Fuse the three heads into one lane-dense output slab -------------
    w_fused = jnp.concatenate([wc, wb, ws], axis=1)          # [C, 9K]
    b_fused = jnp.concatenate([bc, bb, bs], axis=1)          # [1, 9K]
    k_pad = max(128, _round_up(k_total, 128))
    if k_pad != k_total:
        w_fused = jnp.pad(w_fused, ((0, 0), (0, k_pad - k_total)))
        b_fused = jnp.pad(b_fused, ((0, 0), (0, k_pad - k_total)))

    in_dtype = jnp.bfloat16 if use_bf16 else jnp.float32
    itemsize = 2 if use_bf16 else 4
    sublane_align = 16 if use_bf16 else 8

    # ---- Pick a row tile that fits comfortably in scoped VMEM -------------
    # Budget against the tightest generation (v5e 16 MiB scoped default),
    # leaving headroom.  Weights/bias are resident; x/out tiles double-buffer.
    vmem_budget = 12 * 1024 * 1024
    resident = c * k_pad * itemsize + k_pad * 4
    tn = min(_round_up(block_n, sublane_align),
             _round_up(max(n, 1), sublane_align))
    while tn > sublane_align:
        tile_bytes = 2 * (tn * c * itemsize) + 2 * (tn * k_pad * 4)
        if resident + tile_bytes <= vmem_budget:
            break
        tn //= 2
        tn = max(_round_up(tn, sublane_align), sublane_align)

    n_pad = _round_up(max(n, 1), tn)
    if n_pad != n:
        x = jnp.pad(x, ((0, n_pad - n), (0, 0)))

    x_in = x.astype(in_dtype)
    w_in = w_fused.astype(in_dtype)
    b_in = b_fused.astype(jnp.float32)

    grid = (n_pad // tn,)

    cost = pl.CostEstimate(
        flops=2 * n_pad * c * k_pad,
        transcendentals=0,
        bytes_accessed=(x_in.size * itemsize + w_in.size * itemsize
                        + b_in.size * 4 + n_pad * k_pad * 4),
    )

    out = pl.pallas_call(
        _fused_predictor_kernel,
        out_shape=jax.ShapeDtypeStruct((n_pad, k_pad), jnp.float32),
        grid_spec=pltpu.PrefetchScalarGridSpec(
            num_scalar_prefetch=0,
            grid=grid,
            in_specs=[
                # Row tile of activations: streamed / double-buffered.
                pl.BlockSpec((tn, c), lambda i: (i, 0)),
                # Fused weight + bias: block index constant -> VMEM-resident.
                pl.BlockSpec((c, k_pad), lambda i: (0, 0)),
                pl.BlockSpec((1, k_pad), lambda i: (0, 0)),
            ],
            out_specs=pl.BlockSpec((tn, k_pad), lambda i: (i, 0)),
        ),
        compiler_params=pltpu.CompilerParams(
            dimension_semantics=("parallel",),
        ),
        cost_estimate=cost,
    )(x_in, w_in, b_in)

    # ---- Strip padding and split back into the three heads ----------------
    scores = out[:n, :k]
    bbox_deltas = out[:n, k:k + k4]
    bbox_stds = out[:n, k + k4:k_total]
    return scores, bbox_deltas, bbox_stds


def init_params(key, in_channels, num_classes):
    """Deterministic synthetic init matching nn.Linear shapes.

    PyTorch stores W as [out, in]; we keep the transposed [in, out] layout
    for the kernel (x @ W).
    """
    ks = jax.random.split(key, 6)
    k4 = num_classes * 4
    scale = 1.0 / jnp.sqrt(in_channels)
    return {
        "cls_w": jax.random.uniform(ks[0], (in_channels, num_classes),
                                    jnp.float32, -scale, scale),
        "cls_b": jax.random.uniform(ks[1], (1, num_classes),
                                    jnp.float32, -scale, scale),
        "bbox_w": jax.random.uniform(ks[2], (in_channels, k4),
                                     jnp.float32, -scale, scale),
        "bbox_b": jax.random.uniform(ks[3], (1, k4),
                                     jnp.float32, -scale, scale),
        "std_w": jax.random.uniform(ks[4], (in_channels, k4),
                                    jnp.float32, -scale, scale),
        "std_b": jax.random.uniform(ks[5], (1, k4),
                                    jnp.float32, -scale, scale),
    }


if __name__ == "__main__":
    key = jax.random.PRNGKey(0)
    k_param, k_x = jax.random.split(key)

    batch = 2
    in_channels = 32
    num_classes = 5

    params = init_params(k_param, in_channels, num_classes)
    # Input shaped like RoI-pooled features: [N, C, 1, 1]
    x = jax.random.normal(k_x, (batch, in_channels, 1, 1), jnp.float32)

    scores, bbox_deltas, bbox_stds = fast_rcnn_predictor_kl(x, params)
    jax.block_until_ready((scores, bbox_deltas, bbox_stds))

    assert scores.shape == (batch, num_classes)
    assert bbox_deltas.shape == (batch, num_classes * 4)
    assert bbox_stds.shape == (batch, num_classes * 4)

    # Reference 1: same bf16-cast inputs, f32 math (tight tolerance).
    xf = x.reshape(batch, -1)
    x_bf = xf.astype(jnp.bfloat16).astype(jnp.float32)
    wc_bf = params["cls_w"].astype(jnp.bfloat16).astype(jnp.float32)
    wb_bf = params["bbox_w"].astype(jnp.bfloat16).astype(jnp.float32)
    ws_bf = params["std_w"].astype(jnp.bfloat16).astype(jnp.float32)
    ref_scores = x_bf @ wc_bf + params["cls_b"]
    ref_deltas = x_bf @ wb_bf + params["bbox_b"]
    ref_stds = x_bf @ ws_bf + params["std_b"]
    assert jnp.allclose(scores, ref_scores, atol=1e-3, rtol=1e-3)
    assert jnp.allclose(bbox_deltas, ref_deltas, atol=1e-3, rtol=1e-3)
    assert jnp.allclose(bbox_stds, ref_stds, atol=1e-3, rtol=1e-3)

    # Reference 2: pure f32 semantics (loose tolerance covers bf16 input cast).
    ref_scores32 = xf @ params["cls_w"] + params["cls_b"]
    ref_deltas32 = xf @ params["bbox_w"] + params["bbox_b"]
    ref_stds32 = xf @ params["std_w"] + params["std_b"]
    assert jnp.allclose(scores, ref_scores32, atol=5e-2)
    assert jnp.allclose(bbox_deltas, ref_deltas32, atol=5e-2)
    assert jnp.allclose(bbox_stds, ref_stds32, atol=5e-2)

    print("KERNEL_OK")
</pallas_src>

<mosaic_0001>
module attributes {stable_mosaic.version = 11 : i64} {
  func.func @_fused_predictor_kernel(%arg0: i32, %arg1: memref<16x32xbf16, #tpu.memory_space<vmem>>, %arg2: memref<32x128xbf16, #tpu.memory_space<vmem>>, %arg3: memref<1x128xf32, #tpu.memory_space<vmem>>, %arg4: memref<16x128xf32, #tpu.memory_space<vmem>>) attributes {dimension_semantics = [#tpu.dimension_semantics<parallel>], iteration_bounds = array<i64: 1>, scalar_prefetch = 0 : i64, scratch_operands = 0 : i64, tpu.core_type = #tpu.core_type<tc>, window_params = [{transform_indices = @transform_0, window_bounds = array<i64: 16, 32>}, {pipeline_mode = #tpu.pipeline_mode<synchronous>, transform_indices = @transform_1, window_bounds = array<i64: 32, 128>}, {pipeline_mode = #tpu.pipeline_mode<synchronous>, transform_indices = @transform_2, window_bounds = array<i64: 1, 128>}, {transform_indices = @transform_3, window_bounds = array<i64: 16, 128>}]} {
    %c0 = arith.constant 0 : index
    %c0_0 = arith.constant 0 : index
    %0 = vector.load %arg1[%c0, %c0_0] : memref<16x32xbf16, #tpu.memory_space<vmem>>, vector<16x32xbf16>
    %c0_1 = arith.constant 0 : index
    %c0_2 = arith.constant 0 : index
    %1 = vector.load %arg2[%c0_1, %c0_2] : memref<32x128xbf16, #tpu.memory_space<vmem>>, vector<32x128xbf16>
    %cst = arith.constant dense<0.000000e+00> : vector<16x128xf32>
    %2 = tpu.matmul %0, %1, %cst {dimension_numbers = #tpu.dot_dimension_numbers<[1], [0], [0], [1], [0, 0, 1, 1], [], []>} : vector<16x32xbf16>, vector<32x128xbf16>, vector<16x128xf32> -> vector<16x128xf32>
    %c0_3 = arith.constant 0 : index
    %c0_4 = arith.constant 0 : index
    %3 = vector.load %arg3[%c0_3, %c0_4] : memref<1x128xf32, #tpu.memory_space<vmem>>, vector<1x128xf32>
    %4 = vector.broadcast %3 : vector<1x128xf32> to vector<16x128xf32>
    %5 = arith.addf %2, %4 : vector<16x128xf32>
    %c0_5 = arith.constant 0 : index
    %c0_6 = arith.constant 0 : index
    %6 = vector.load %arg4[%c0_5, %c0_6] : memref<16x128xf32, #tpu.memory_space<vmem>>, vector<16x128xf32>
    tpu.vector_store %arg4[%c0_5, %c0_6], %5 {strides = array<i32>} : memref<16x128xf32, #tpu.memory_space<vmem>>, vector<16x128xf32>,
    return
  }
  func.func @transform_0(%arg0: i32) -> (i32, i32) {
    %c0_i32 = arith.constant 0 : i32
    %c0_i32_0 = arith.constant 0 : i32
    return %arg0, %c0_i32 : i32, i32
  }
  func.func @transform_1(%arg0: i32) -> (i32, i32) {
    %c0_i32 = arith.constant 0 : i32
    %c0_i32_0 = arith.constant 0 : i32
    %c0_i32_1 = arith.constant 0 : i32
    return %c0_i32, %c0_i32_0 : i32, i32
  }
  func.func @transform_2(%arg0: i32) -> (i32, i32) {
    %c0_i32 = arith.constant 0 : i32
    %c0_i32_0 = arith.constant 0 : i32
    %c0_i32_1 = arith.constant 0 : i32
    return %c0_i32, %c0_i32_0 : i32, i32
  }
  func.func @transform_3(%arg0: i32) -> (i32, i32) {
    %c0_i32 = arith.constant 0 : i32
    %c0_i32_0 = arith.constant 0 : i32
    return %arg0, %c0_i32 : i32, i32
  }
}

</mosaic_0001>

<llo_original>
// kernel: fast_rcnn_predictor_kl.1
$region0: #{fast_rcnn_predictor_kl.1}
  #allocation0 [shape = 'u32[]', space=smem, size = 0x4, offset = 0x4, fixed_abs, tag = 'smem constant byte address 0x4 - core index']
  #allocation1 [shape = 'u32[72,128]{1,0:T(1,128)}', space=vmem, size = 0x9000, scoped, tag = 'internal scratch']
  %s0 = inlined_call_operand.vmem [shape: bf16[16,32], index: 0, kind: input, shape index: {}]
  %s1 = inlined_call_operand.vmem [shape: bf16[32,128], index: 1, kind: input, shape index: {}]
  %s2 = inlined_call_operand.vmem [shape: f32[1,128], index: 2, kind: input, shape index: {}]
  %s3 = inlined_call_operand.vmem [shape: f32[16,128], index: 3, kind: output, shape index: {}]
  %s4 = sld [smem:[#allocation0]]
  $region22: #{fast_rcnn_predictor_kl.1} parent=0
    _
  %s6 = ssub.s32 1, %s4
  %s7 = scalar_select 0, %s6, %s4
  // Predicated region
  $region2: #{fast_rcnn_predictor_kl.1} parent=0 // pred_check
    _
  $region3: #{fast_rcnn_predictor_kl.1} parent=0 // pred_check_branch
    %9 = sbr.rel (0) target = $region5
  $region4: #{fast_rcnn_predictor_kl.1} parent=0 // pred_region
    _
  $region5: #{fast_rcnn_predictor_kl.1} parent=0 // pred_fallthru
    _
  // Predicated region
  $region6: #{fast_rcnn_predictor_kl.1} parent=0 // pred_check
    _
  $region7: #{fast_rcnn_predictor_kl.1} parent=0 // pred_check_branch
    %11 = sbr.rel (0) target = $region9
  $region8: #{fast_rcnn_predictor_kl.1} parent=0 // pred_region
    _
  $region9: #{fast_rcnn_predictor_kl.1} parent=0 // pred_fallthru
    _
  // Predicated region
  $region10: #{fast_rcnn_predictor_kl.1} parent=0 // pred_check
    _
  $region11: #{fast_rcnn_predictor_kl.1} parent=0 // pred_check_branch
    %13 = sbr.rel (0) target = $region13
  $region12: #{fast_rcnn_predictor_kl.1} parent=0 // pred_region
    _
  $region13: #{fast_rcnn_predictor_kl.1} parent=0 // pred_fallthru
    _
  %v15 = vld [vmem:[%s0] sm:$0xf]
  %v16 = vld [vmem:[%s0 + $0x4] sm:$0xf]
  %v17 = vld [vmem:[%s1] sm:$0xf]
  %v18 = vld [vmem:[%s1 + $0x4] sm:$0xf]
  %v19 = vld [vmem:[%s1 + $0x8] sm:$0xf]
  %v20 = vld [vmem:[%s1 + $0xc] sm:$0xf]
  %v21 = vld [vmem:[%s2] sm:$0x1]
  %v23 = vperm.slane %v21, 0
  %v27 = vunpack.c.l.b16 %v15
  %v28 = vunpack.c.l.b16 %v16
  %v29 = vpack.c.b16 %v28, %v27
  %v34 = vunpack.c.l.b16 %v17
  %v35 = vunpack.c.l.b16 %v18
  %v36 = vunpack.c.l.b16 %v19
  %v37 = vunpack.c.l.b16 %v20
  %v38 = vpack.c.b16 %v35, %v34
  %v39 = vpack.c.b16 %v37, %v36
  %vm42 = vcmask 261120
  %v44 = vsel %vm42, %v29, 0
  %46 = vmatpush.bf16.msra.mxu0 0
  %47 = vmatpush.bf16.msra.mxu0 0
  %48 = vmatpush.bf16.msra.mxu0 0
  %49 = vmatpush.bf16.msra.mxu0 0
  %50 = vmatpush.bf16.msra.mxu0 0
  %51 = vmatpush.bf16.msra.mxu0 0
  %52 = vmatpush.bf16.msra.mxu0 %v39
  %53 = vmatpush.bf16.msra.mxu0 %v38
  %54 = vmatmul.bf16.gmra.mxu0 %v44
  %v55 = vpop.f32.mrf.mxu0
  %v56 = vadd.f32 %v23, %v55
  %v57 = vpop.f32.mrf.mxu0
  %v58 = vadd.f32 %v23, %v57
  %59 = vdwg.mxu0
  %60 = vst [vmem:[%s3] sm:$0xff] %v56
  %61 = vst [vmem:[%s3 + $0x8] sm:$0xff] %v58
  // Predicated region
  $region14: #{fast_rcnn_predictor_kl.1} parent=0 // pred_check
    _
  $region15: #{fast_rcnn_predictor_kl.1} parent=0 // pred_check_branch
    %63 = sbr.rel (0) target = $region17
  $region16: #{fast_rcnn_predictor_kl.1} parent=0 // pred_region
    _
  $region17: #{fast_rcnn_predictor_kl.1} parent=0 // pred_fallthru
    _
  // Predicated region
  $region18: #{fast_rcnn_predictor_kl.1} parent=0 // pred_check
    _
  $region19: #{fast_rcnn_predictor_kl.1} parent=0 // pred_check_branch
    %65 = sbr.rel (0) target = $region21
  $region20: #{fast_rcnn_predictor_kl.1} parent=0 // pred_region
    _
  $region21: #{fast_rcnn_predictor_kl.1} parent=0 // pred_fallthru
    _

</llo_original>
